<compile_context>
chip_gen: v5e
topology: v5e:2x2
jax: 0.10.0
libtpu: 0.0.40
codegen_flags: <defaults>
</compile_context>

<pallas_src>
import functools

import jax
import jax.numpy as jnp
from jax.experimental import pallas as pl
from jax.experimental.pallas import tpu as pltpu


def _masked_l1_kernel(pred_ref, tgt_ref, abs_ref):
    """One grid step: reduce an (rb, 128) tile to an (8, 128) partial tile.

    pred_ref, tgt_ref: (rb, 128) mask-pre-multiplied values in native dtype
    abs_ref:           (1, 8, 128) float32 per-block partial sum of |p - t|
    """
    p = pred_ref[...].astype(jnp.float32)
    t = tgt_ref[...].astype(jnp.float32)
    a = jnp.abs(p - t)                      # mask already folded in -> exact torch semantics
    rb = a.shape[0]
    # Group-sum sublane tiles down to one lane-dense (8, 128) tile; the final
    # scalar reduction is deferred to plain JAX after the kernel.
    abs_ref[...] = jnp.sum(a.reshape(rb // 8, 8, 128), axis=0)[None]


def _sublane_multiple(dtype):
    # f32 -> 8, bf16/f16 -> 16, int8/fp8 -> 32 (min second-to-last tile dim).
    return max(8, 32 // jnp.dtype(dtype).itemsize)


@functools.partial(jax.jit, static_argnames=("row_block",))
def reg_l1_loss(output, mask, ind, target, *, row_block=2048):
    """output: (B, C, H, W); mask: (B, K) bool; ind: (B, K) int32 in [0, H*W);
    target: (B, K, C). Returns scalar float32 loss."""
    B, C, H, W = output.shape
    K = ind.shape[1]

    # --- gather: pred[b, k, c] = output[b, c, ind[b, k]] ---------------------
    # TODO(synk): the data-dependent H*W gather stays in XLA; fusing it into the
    # kernel (scalar-prefetched ind + HBM output ref) is only worth it if a
    # profile shows take_along_axis dominating.
    feat = output.reshape(B, C, H * W)
    pred = jnp.take_along_axis(feat, ind[:, None, :], axis=2)     # (B, C, K)
    pred = jnp.transpose(pred, (0, 2, 1))                         # (B, K, C)

    # --- fold the mask into pred/target (fuses with producers above) --------
    mask_f = mask.astype(jnp.float32)                             # (B, K)
    pred_m = pred * mask_f[:, :, None].astype(pred.dtype)         # (B, K, C) native dtype
    tgt_m = target * mask_f[:, :, None].astype(target.dtype)      # (B, K, C) native dtype

    # --- flatten to a lane-dense (rows, 128) layout, minimal zero padding ----
    T = B * K * C
    rows = pl.cdiv(T, 128)
    sub = max(_sublane_multiple(pred.dtype), _sublane_multiple(target.dtype))

    nblocks = pl.cdiv(rows, row_block)
    if nblocks == 1 and rows > sub:
        nblocks = 2            # use both TensorCores on v7x whenever possible
    rb = pl.cdiv(pl.cdiv(rows, nblocks), sub) * sub
    rows_pad = rb * nblocks
    Tpad = rows_pad * 128

    def _prep(x):
        x = x.reshape(-1)
        x = jnp.pad(x, (0, Tpad - T))      # fuses with the mask-multiply producer
        return x.reshape(rows_pad, 128)

    pred2 = _prep(pred_m)      # native dtype; cast to f32 in-kernel
    tgt2 = _prep(tgt_m)

    abs_p = pl.pallas_call(
        _masked_l1_kernel,
        out_shape=jax.ShapeDtypeStruct((nblocks, 8, 128), jnp.float32),
        grid_spec=pltpu.PrefetchScalarGridSpec(
            num_scalar_prefetch=0,
            grid=(nblocks,),
            in_specs=[
                pl.BlockSpec((rb, 128), lambda i: (i, 0)),
                pl.BlockSpec((rb, 128), lambda i: (i, 0)),
            ],
            out_specs=pl.BlockSpec((1, 8, 128), lambda i: (i, 0, 0)),
        ),
        compiler_params=pltpu.CompilerParams(
            dimension_semantics=("parallel",)),
    )(pred2, tgt2)

    num = jnp.sum(abs_p)
    # Denominator of the expanded (B,K,C) mask == C * sum of the (B,K) mask.
    den = jnp.float32(C) * jnp.sum(mask_f) + 1e-4
    return num / den


def _reg_l1_ref(output, mask, ind, target):
    """Pure-JAX reference mirroring the PyTorch RegL1Loss forward."""
    B, C, H, W = output.shape
    feat = output.reshape(B, C, H * W)
    pred = jnp.take_along_axis(feat, ind[:, None, :], axis=2)
    pred = jnp.transpose(pred, (0, 2, 1)).astype(jnp.float32)
    m = jnp.broadcast_to(mask.astype(jnp.float32)[:, :, None], pred.shape)
    t = target.astype(jnp.float32)
    loss = jnp.sum(jnp.abs(pred * m - t * m))
    return loss / (jnp.sum(m) + 1e-4)


if __name__ == "__main__":
    key = jax.random.PRNGKey(0)
    k1, k2, k3, k4 = jax.random.split(key, 4)

    B, C, H, W, K = 2, 4, 16, 16, 8

    output = jax.random.normal(k1, (B, C, H, W), jnp.float32)
    target = jax.random.normal(k2, (B, K, C), jnp.float32)
    ind = jax.random.randint(k3, (B, K), 0, H * W, dtype=jnp.int32)
    mask = jax.random.uniform(k4, (B, K)) > 0.3

    out = reg_l1_loss(output, mask, ind, target)
    out = jax.block_until_ready(out)

    ref = _reg_l1_ref(output, mask, ind, target)
    assert jnp.isfinite(out), "kernel produced non-finite loss"
    assert jnp.allclose(out, ref, rtol=1e-5, atol=1e-6), (out, ref)

    print("KERNEL_OK")
</pallas_src>

<mosaic_0001>
module attributes {stable_mosaic.version = 11 : i64} {
  func.func @_masked_l1_kernel(%arg0: i32, %arg1: memref<8x128xf32, #tpu.memory_space<vmem>>, %arg2: memref<8x128xf32, #tpu.memory_space<vmem>>, %arg3: memref<1x8x128xf32, #tpu.memory_space<vmem>>) attributes {dimension_semantics = [#tpu.dimension_semantics<parallel>], iteration_bounds = array<i64: 1>, scalar_prefetch = 0 : i64, scratch_operands = 0 : i64, tpu.core_type = #tpu.core_type<tc>, window_params = [{transform_indices = @transform_0, window_bounds = array<i64: 8, 128>}, {transform_indices = @transform_1, window_bounds = array<i64: 8, 128>}, {transform_indices = @transform_2, window_bounds = array<i64: 1, 8, 128>}]} {
    %c0 = arith.constant 0 : index
    %c0_0 = arith.constant 0 : index
    %0 = vector.load %arg1[%c0, %c0_0] : memref<8x128xf32, #tpu.memory_space<vmem>>, vector<8x128xf32>
    %c0_1 = arith.constant 0 : index
    %c0_2 = arith.constant 0 : index
    %1 = vector.load %arg2[%c0_1, %c0_2] : memref<8x128xf32, #tpu.memory_space<vmem>>, vector<8x128xf32>
    %2 = arith.subf %0, %1 : vector<8x128xf32>
    %3 = math.absf %2 : vector<8x128xf32>
    %4 = vector.shape_cast %3 : vector<8x128xf32> to vector<1x8x128xf32>
    %cst = arith.constant dense<0.000000e+00> : vector<8x128xf32>
    %5 = vector.multi_reduction <add>, %4, %cst [0] : vector<1x8x128xf32> to vector<8x128xf32>
    %6 = vector.shape_cast %5 : vector<8x128xf32> to vector<1x8x128xf32>
    %c0_3 = arith.constant 0 : index
    %c0_4 = arith.constant 0 : index
    %c0_5 = arith.constant 0 : index
    %7 = vector.load %arg3[%c0_3, %c0_4, %c0_5] : memref<1x8x128xf32, #tpu.memory_space<vmem>>, vector<1x8x128xf32>
    tpu.vector_store %arg3[%c0_3, %c0_4, %c0_5], %6 {strides = array<i32>} : memref<1x8x128xf32, #tpu.memory_space<vmem>>, vector<1x8x128xf32>,
    return
  }
  func.func @transform_0(%arg0: i32) -> (i32, i32) {
    %c0_i32 = arith.constant 0 : i32
    %c0_i32_0 = arith.constant 0 : i32
    return %arg0, %c0_i32 : i32, i32
  }
  func.func @transform_1(%arg0: i32) -> (i32, i32) {
    %c0_i32 = arith.constant 0 : i32
    %c0_i32_0 = arith.constant 0 : i32
    return %arg0, %c0_i32 : i32, i32
  }
  func.func @transform_2(%arg0: i32) -> (i32, i32, i32) {
    %c0_i32 = arith.constant 0 : i32
    %c0_i32_0 = arith.constant 0 : i32
    %c0_i32_1 = arith.constant 0 : i32
    return %arg0, %c0_i32, %c0_i32_0 : i32, i32, i32
  }
}

</mosaic_0001>

<llo_original>
// kernel: reg_l1_loss.1
$region0: #{reg_l1_loss.1}
  #allocation0 [shape = 'u32[]', space=smem, size = 0x4, offset = 0x4, fixed_abs, tag = 'smem constant byte address 0x4 - core index']
  #allocation1 [shape = 'u32[72,128]{1,0:T(1,128)}', space=vmem, size = 0x9000, scoped, tag = 'internal scratch']
  %s0 = inlined_call_operand.vmem [shape: f32[8,128], index: 0, kind: input, shape index: {}]
  %s1 = inlined_call_operand.vmem [shape: f32[8,128], index: 1, kind: input, shape index: {}]
  %s2 = inlined_call_operand.vmem [shape: f32[1,8,128], index: 2, kind: output, shape index: {}]
  %s3 = sld [smem:[#allocation0]]
  $region18: #{reg_l1_loss.1} parent=0
    _
  %s5 = ssub.s32 1, %s3
  %s6 = scalar_select 0, %s5, %s3
  // Predicated region
  $region2: #{reg_l1_loss.1} parent=0 // pred_check
    _
  $region3: #{reg_l1_loss.1} parent=0 // pred_check_branch
    %8 = sbr.rel (0) target = $region5
  $region4: #{reg_l1_loss.1} parent=0 // pred_region
    _
  $region5: #{reg_l1_loss.1} parent=0 // pred_fallthru
    _
  // Predicated region
  $region6: #{reg_l1_loss.1} parent=0 // pred_check
    _
  $region7: #{reg_l1_loss.1} parent=0 // pred_check_branch
    %10 = sbr.rel (0) target = $region9
  $region8: #{reg_l1_loss.1} parent=0 // pred_region
    _
  $region9: #{reg_l1_loss.1} parent=0 // pred_fallthru
    _
  %v11 = vld [vmem:[%s0] sm:$0xff]
  %v12 = vld [vmem:[%s1] sm:$0xff]
  %v13 = vsub.f32 %v11, %v12
  %v14 = vand.u32 2147483647, %v13
  %v15 = vadd.f32 %v14, 0.0
  %16 = vst [vmem:[%s2] sm:$0xff] %v15
  // Predicated region
  $region10: #{reg_l1_loss.1} parent=0 // pred_check
    _
  $region11: #{reg_l1_loss.1} parent=0 // pred_check_branch
    %18 = sbr.rel (0) target = $region13
  $region12: #{reg_l1_loss.1} parent=0 // pred_region
    _
  $region13: #{reg_l1_loss.1} parent=0 // pred_fallthru
    _
  // Predicated region
  $region14: #{reg_l1_loss.1} parent=0 // pred_check
    _
  $region15: #{reg_l1_loss.1} parent=0 // pred_check_branch
    %20 = sbr.rel (0) target = $region17
  $region16: #{reg_l1_loss.1} parent=0 // pred_region
    _
  $region17: #{reg_l1_loss.1} parent=0 // pred_fallthru
    _

</llo_original>
